<compile_context>
chip_gen: v7x
topology: tpu7x:2x2x1
jax: 0.10.0
libtpu: 0.0.40
codegen_flags: <defaults>
</compile_context>

<pallas_src>
import functools
import math

import numpy as np

import jax
import jax.numpy as jnp
from jax import lax
from jax.experimental import pallas as pl
from jax.experimental.pallas import tpu as pltpu


# Comfortably above the ~6 MB peak per-kernel usage, below every generation's
# physical VMEM (v7x: 64 MiB per TensorCore).
_VMEM_LIMIT = 32 * 1024 * 1024

_WDIMS = (16, 8, 4, 2)       # W extent entering each conv layer
_COUTS = (16, 32, 64, 128)   # Conv2d out_channels per layer


# ---------------------------------------------------------------------------
# One-time probe: which way does pltpu.roll rotate on this backend?
# ---------------------------------------------------------------------------
def _roll_moves_forward():
    """Returns True if pltpu.roll(x, s) moves element i to index i+s (i.e.
    jnp.roll semantics).  The W-pool selection matrix is chosen to match, so
    the pooling epilogue is correct under either rotate convention."""
    def kernel(x_ref, o_ref):
        o_ref[...] = pltpu.roll(x_ref[...], 1, axis=1)

    x = lax.broadcasted_iota(jnp.float32, (8, 128), 1)
    out = pl.pallas_call(
        kernel, out_shape=jax.ShapeDtypeStruct((8, 128), jnp.float32))(x)
    return bool(out[0, 1] == 0.0)


# ---------------------------------------------------------------------------
# Shared epilogue: folded-BN + ReLU + 2x2 max-pool (H max + roll/max/select W)
# ---------------------------------------------------------------------------
def _bn_relu_pool(acc_e, acc_o, scale, bias, sel, cout):
    """acc_e/acc_o: (hh, wcout) f32 conv rows 2i / 2i+1.  Returns f32
    (hh, wcout//2) pooled activation (caller casts to bf16)."""
    ye = jnp.maximum(acc_e * scale + bias, 0.0)
    yo = jnp.maximum(acc_o * scale + bias, 0.0)
    yh = jnp.maximum(ye, yo)                       # H-direction 2x pool
    wcout = yh.shape[-1]
    # Bring the partner W lane block alongside on the XLU, max on the VPU,
    # then ONE 0/1-selection matmul extracts the pooled lanes (lane-dense).
    m = jnp.maximum(yh, pltpu.roll(yh, wcout - cout, axis=1))
    return jnp.dot(m.astype(jnp.bfloat16), sel,
                   preferred_element_type=jnp.float32)


# ---------------------------------------------------------------------------
# Layer 1 kernel: single K-stacked dot per parity (LHS slabs built in wrapper)
# ---------------------------------------------------------------------------
def _conv1_kernel(le_ref, lo_ref, b_ref, sel_ref, scale_ref, bias_ref, o_ref,
                  *, cout):
    """le/lo_ref : (1, hh, 128) bf16 -- per-parity im2row slabs; lanes
                   [kh*wcin, (kh+1)*wcin) hold padded row 2i+kh (even) /
                   2i+1+kh (odd); lanes >= 5*wcin are zero.
       b_ref     : (128, wcout) bf16 -- kh-stacked banded weights (zero-padded K).
       sel_ref   : (wcout, wcout//2) bf16 -- 0/1 W-pool selection.
       o_ref     : (1, hh, wcout//2) bf16 -- pooled, lane-dense output."""
    b = b_ref[...]
    acc_e = jnp.dot(le_ref[0], b, preferred_element_type=jnp.float32)
    acc_o = jnp.dot(lo_ref[0], b, preferred_element_type=jnp.float32)
    pooled = _bn_relu_pool(acc_e, acc_o, scale_ref[...], bias_ref[...],
                           sel_ref[...], cout)
    o_ref[0] = pooled.astype(o_ref.dtype)


def conv1_pool(lhs_e, lhs_o, b_stk, sel, scale_row, bias_row, *, cout):
    n, hh, kdim = lhs_e.shape
    wcout = b_stk.shape[1]
    kernel = functools.partial(_conv1_kernel, cout=cout)
    return pl.pallas_call(
        kernel,
        out_shape=jax.ShapeDtypeStruct((n, hh, wcout // 2), jnp.bfloat16),
        grid_spec=pltpu.PrefetchScalarGridSpec(
            num_scalar_prefetch=0,
            grid=(n,),
            in_specs=[
                pl.BlockSpec((1, hh, kdim), lambda i: (i, 0, 0)),
                pl.BlockSpec((1, hh, kdim), lambda i: (i, 0, 0)),
                pl.BlockSpec((kdim, wcout), lambda i: (0, 0)),
                pl.BlockSpec((wcout, wcout // 2), lambda i: (0, 0)),
                pl.BlockSpec((1, wcout), lambda i: (0, 0)),
                pl.BlockSpec((1, wcout), lambda i: (0, 0)),
            ],
            out_specs=pl.BlockSpec((1, hh, wcout // 2), lambda i: (i, 0, 0)),
        ),
        compiler_params=pltpu.CompilerParams(
            dimension_semantics=("parallel",),
            vmem_limit_bytes=_VMEM_LIMIT),
    )(lhs_e, lhs_o, b_stk, sel, scale_row, bias_row)


# ---------------------------------------------------------------------------
# Layers 2-4 kernel: tap-pair dots (K=256/256/128), H halo handled in-kernel
# ---------------------------------------------------------------------------
def _conv_mid_kernel(x_ref, b_ref, sel_ref, scale_ref, bias_ref, o_ref,
                     acc_e, acc_o, *, hh, wcin, cout):
    """x_ref : (hh, 2*wcin) bf16 -- UNPADDED input with H-row pairs packed on
               lanes: x_ref[j, s*wcin + l] = input_row[2j + s, l].
       b_ref : (5*wcin, wcout) bf16 -- kh-stacked banded weights [B0..B4].
       acc_e/acc_o : (hh, wcout) f32 scratch for conv rows 2i / 2i+1.
       The conv H-halo (padding=2) is handled by accumulating the shifted tap
       groups at row offsets; out-of-range taps hit zeros and are skipped."""
    f32 = jnp.float32
    xfull = x_ref[...]                                         # (hh, 2*wcin)

    # Tap groups reading packed row j (no halo): even taps (2,3), odd (1,2).
    acc_e[...] = jnp.dot(xfull, b_ref[pl.ds(2 * wcin, 2 * wcin), :],
                         preferred_element_type=f32)
    acc_o[...] = jnp.dot(xfull, b_ref[pl.ds(wcin, 2 * wcin), :],
                         preferred_element_type=f32)

    # Tap groups reading packed row j-1: output rows 1..hh-1 <- rows 0..hh-2.
    top = x_ref[pl.ds(0, hh - 1), :]
    acc_e[pl.ds(1, hh - 1), :] += jnp.dot(
        top, b_ref[pl.ds(0, 2 * wcin), :], preferred_element_type=f32)
    acc_o[pl.ds(1, hh - 1), :] += jnp.dot(
        top[:, wcin:], b_ref[pl.ds(0, wcin), :], preferred_element_type=f32)

    # Tap groups reading packed row j+1: output rows 0..hh-2 <- rows 1..hh-1.
    bot = x_ref[pl.ds(1, hh - 1), :]
    acc_o[pl.ds(0, hh - 1), :] += jnp.dot(
        bot, b_ref[pl.ds(3 * wcin, 2 * wcin), :], preferred_element_type=f32)
    acc_e[pl.ds(0, hh - 1), :] += jnp.dot(
        bot[:, :wcin], b_ref[pl.ds(4 * wcin, wcin), :],
        preferred_element_type=f32)

    pooled = _bn_relu_pool(acc_e[...], acc_o[...], scale_ref[...],
                           bias_ref[...], sel_ref[...], cout)
    o_ref[0] = pooled.astype(o_ref.dtype)


def conv_mid_pool(x_packed, b_stk, sel, scale_row, bias_row, *, cout):
    n, hh, wcin2 = x_packed.shape
    wcin = wcin2 // 2
    wcout = b_stk.shape[1]
    kernel = functools.partial(_conv_mid_kernel, hh=hh, wcin=wcin, cout=cout)
    return pl.pallas_call(
        kernel,
        out_shape=jax.ShapeDtypeStruct((n, hh, wcout // 2), jnp.bfloat16),
        grid_spec=pltpu.PrefetchScalarGridSpec(
            num_scalar_prefetch=0,
            grid=(n,),
            in_specs=[
                pl.BlockSpec((None, hh, wcin2), lambda i: (i, 0, 0)),
                pl.BlockSpec((5 * wcin, wcout), lambda i: (0, 0)),
                pl.BlockSpec((wcout, wcout // 2), lambda i: (0, 0)),
                pl.BlockSpec((1, wcout), lambda i: (0, 0)),
                pl.BlockSpec((1, wcout), lambda i: (0, 0)),
            ],
            out_specs=pl.BlockSpec((1, hh, wcout // 2), lambda i: (i, 0, 0)),
            scratch_shapes=[pltpu.VMEM((hh, wcout), jnp.float32),
                            pltpu.VMEM((hh, wcout), jnp.float32)],
        ),
        compiler_params=pltpu.CompilerParams(
            dimension_semantics=("parallel",),
            vmem_limit_bytes=_VMEM_LIMIT),
    )(x_packed, b_stk, sel, scale_row, bias_row)


# ---------------------------------------------------------------------------
# Pallas kernel: fused fc1 + ReLU + (Dropout=identity) + fc2, K-tiled
# ---------------------------------------------------------------------------
def _fc_head_kernel(a_ref, w1_ref, b1_ref, w2_ref, b2_ref, o_ref, acc_ref):
    k = pl.program_id(0)

    @pl.when(k == 0)
    def _():
        acc_ref[...] = jnp.zeros_like(acc_ref)

    acc_ref[...] += jnp.dot(a_ref[...], w1_ref[...],
                            preferred_element_type=jnp.float32)

    @pl.when(k == pl.num_programs(0) - 1)
    def _():
        h = jnp.maximum(acc_ref[...] + b1_ref[...], 0.0)     # fc1 + ReLU
        # Dropout(0.5) is identity in eval mode.
        out = jnp.dot(h.astype(jnp.bfloat16), w2_ref[...],
                      preferred_element_type=jnp.float32)
        o_ref[...] = (out + b2_ref[...]).astype(o_ref.dtype)


def fc_head(a, w1, b1, w2, b2, *, tk=3200):
    """relu(a @ w1 + b1) @ w2 + b2, K-tiled so the w1 weight DMA pipelines."""
    n, k = a.shape
    k2, d1 = w1.shape
    kw2, d2 = w2.shape
    assert k == k2 and k % tk == 0 and kw2 == d1
    b1 = b1.reshape(1, d1).astype(jnp.float32)
    b2 = b2.reshape(1, d2).astype(jnp.float32)
    return pl.pallas_call(
        _fc_head_kernel,
        out_shape=jax.ShapeDtypeStruct((n, d2), jnp.float32),
        grid_spec=pltpu.PrefetchScalarGridSpec(
            num_scalar_prefetch=0,
            grid=(k // tk,),
            in_specs=[
                pl.BlockSpec((n, tk), lambda i: (0, i)),
                pl.BlockSpec((tk, d1), lambda i: (i, 0)),
                pl.BlockSpec((1, d1), lambda i: (0, 0)),
                pl.BlockSpec((kw2, d2), lambda i: (0, 0)),
                pl.BlockSpec((1, d2), lambda i: (0, 0)),
            ],
            out_specs=pl.BlockSpec((n, d2), lambda i: (0, 0)),
            scratch_shapes=[pltpu.VMEM((n, d1), jnp.float32)],
        ),
        compiler_params=pltpu.CompilerParams(
            dimension_semantics=("arbitrary",),
            vmem_limit_bytes=_VMEM_LIMIT),
    )(a, w1, b1, w2, b2)


# ---------------------------------------------------------------------------
# One-time weight preparation (kept OFF the per-step launch path)
# ---------------------------------------------------------------------------
def _banded_taps(w_conv, wdim):
    """b5[kh, win*cin + ci, w*cout + co] = w_conv[kh, win - w + 2, ci, co]:
    the W-direction conv (padding=2) expressed as a dense matmul per kh."""
    _, _, cin, cout = w_conv.shape
    b5 = np.zeros((5, wdim * cin, wdim * cout), np.float32)
    for w in range(wdim):
        for kw in range(5):
            win = w + kw - 2
            if 0 <= win < wdim:
                b5[:, win * cin:(win + 1) * cin,
                   w * cout:(w + 1) * cout] = w_conv[:, kw]
    return b5


def _pool_select(wdim, cout, even):
    """0/1 matrix extracting the even- (or odd-) W lane blocks; the W half of
    the 2x2 max-pool after the partner block has been rolled alongside."""
    wcout = wdim * cout
    s = np.zeros((wcout, wcout // 2), np.float32)
    for j in range(wdim // 2):
        src = (2 * j if even else 2 * j + 1) * cout
        for c in range(cout):
            s[src + c, j * cout + c] = 1.0
    return s


def prepare_params(params):
    roll_fwd = _roll_moves_forward()
    prep_conv = []
    for li, lp in enumerate(params["conv"]):
        w_np = np.asarray(lp["w"], np.float32)              # (5, 5, cin, cout)
        cin, cout = w_np.shape[2], w_np.shape[3]
        wdim = _WDIMS[li]
        wcin, wcout = wdim * cin, wdim * cout
        b_stk = _banded_taps(w_np, wdim).reshape(5 * wcin, wcout)
        if li == 0:
            # Pad K (=80) to 128: full-lane loads and MXU-native K on v5e.
            b_pad = np.zeros((128, wcout), np.float32)
            b_pad[:5 * wcin] = b_stk
            b_stk = b_pad
        sel = _pool_select(wdim, cout, even=roll_fwd)
        scale_row = np.tile(np.asarray(lp["scale"], np.float32), wdim)
        bias_row = np.tile(np.asarray(lp["bias"], np.float32), wdim)
        prep_conv.append(dict(
            b=jnp.asarray(b_stk, jnp.bfloat16),
            sel=jnp.asarray(sel, jnp.bfloat16),
            scale=jnp.asarray(scale_row.reshape(1, wcout), jnp.float32),
            bias=jnp.asarray(bias_row.reshape(1, wcout), jnp.float32),
        ))
    return dict(
        conv1=prep_conv[0],
        conv_mid=prep_conv[1:],
        fc1_w=params["fc1_w"].astype(jnp.bfloat16),
        fc1_b=params["fc1_b"].astype(jnp.float32),
        fc2_w=params["fc2_w"].astype(jnp.bfloat16),
        fc2_b=params["fc2_b"].astype(jnp.float32),
    )


# ---------------------------------------------------------------------------
# Full CNN forward (matches PyTorch module semantics in eval mode)
# ---------------------------------------------------------------------------
def cnn_forward(x_nchw, prep):
    n, c0, h, w = x_nchw.shape
    # NCHW -> channels-last "rows" layout (N, H, W*C), lane index = w*C + c.
    x = jnp.transpose(x_nchw, (0, 2, 3, 1)).reshape(n, h, w * c0)
    x = x.astype(jnp.bfloat16)

    # Layer 1: build the per-parity kh-stacked LHS slabs in the wrapper (the
    # input is only 64 KB/image), zero-padded in K up to the weight's K.
    hh = h // 2
    wcin1 = w * c0
    kdim = prep["conv1"]["b"].shape[0]
    xpad = jnp.pad(x, ((0, 0), (2, 2), (0, 0)))              # H halo (pad=2)
    slabs_e = [xpad[:, kh:kh + 2 * hh:2, :] for kh in range(5)]
    slabs_o = [xpad[:, kh + 1:kh + 1 + 2 * hh:2, :] for kh in range(5)]
    if kdim > 5 * wcin1:
        zpad = [jnp.zeros((n, hh, kdim - 5 * wcin1), jnp.bfloat16)]
    else:
        zpad = []
    lhs_e = jnp.concatenate(slabs_e + zpad, axis=-1)
    lhs_o = jnp.concatenate(slabs_o + zpad, axis=-1)
    y = conv1_pool(lhs_e, lhs_o, prep["conv1"]["b"], prep["conv1"]["sel"],
                   prep["conv1"]["scale"], prep["conv1"]["bias"],
                   cout=_COUTS[0])

    # Layers 2-4: row-pair packing is a free reshape; the H halo is handled
    # inside the kernel (no per-layer jnp.pad HBM round trip).
    for lp, cout in zip(prep["conv_mid"], _COUTS[1:]):
        nb, hcur, lanes = y.shape
        y = y.reshape(nb, hcur // 2, 2 * lanes)
        y = conv_mid_pool(y, lp["b"], lp["sel"], lp["scale"], lp["bias"],
                          cout=cout)

    # y: (N, 125, 128) bf16; flatten in (h, c)-major order, matching the
    # layout fc1_w is stored in (see init_params).
    a = y.reshape(n, -1)
    return fc_head(a, prep["fc1_w"], prep["fc1_b"], prep["fc2_w"],
                   prep["fc2_b"])


# ---------------------------------------------------------------------------
# Deterministic parameter init (shapes from the module's __init__)
# ---------------------------------------------------------------------------
def init_params(key):
    eps = 1e-5
    chans = [(1, 16), (16, 32), (32, 64), (64, 128)]
    keys = iter(jax.random.split(key, 32))
    conv = []
    for cin, cout in chans:
        fan_in = 25 * cin
        w = jax.random.normal(next(keys), (5, 5, cin, cout),
                              jnp.float32) / math.sqrt(fan_in)
        b = 0.05 * jax.random.normal(next(keys), (cout,), jnp.float32)
        gamma = 1.0 + 0.1 * jax.random.normal(next(keys), (cout,), jnp.float32)
        beta = 0.1 * jax.random.normal(next(keys), (cout,), jnp.float32)
        mean = 0.1 * jax.random.normal(next(keys), (cout,), jnp.float32)
        var = 1.0 + 0.1 * jax.random.uniform(next(keys), (cout,), jnp.float32)
        s = gamma / jnp.sqrt(var + eps)          # folded eval-mode BN scale
        bias_eff = (b - mean) * s + beta         # folded conv-bias + BN shift
        conv.append(dict(w=w, scale=s, bias=bias_eff,
                         b=b, gamma=gamma, beta=beta, mean=mean, var=var))
    # fc1 weight stored in (h, c)-major layout: row index = h*128 + c.
    # (A real PyTorch checkpoint flattens NCHW (c-major); permute at load.)
    fc1_w = jax.random.normal(next(keys), (125 * 128, 256),
                              jnp.float32) / math.sqrt(128 * 125)
    fc1_b = 0.05 * jax.random.normal(next(keys), (256,), jnp.float32)
    fc2_w = jax.random.normal(next(keys), (256, 7),
                              jnp.float32) / math.sqrt(256)
    fc2_b = 0.05 * jax.random.normal(next(keys), (7,), jnp.float32)
    return dict(conv=conv, fc1_w=fc1_w, fc1_b=fc1_b, fc2_w=fc2_w, fc2_b=fc2_b)


# ---------------------------------------------------------------------------
# Pure-JAX reference (XLA conv, f32) for validation
# ---------------------------------------------------------------------------
def reference_forward(x_nchw, params):
    eps = 1e-5
    x = x_nchw
    for lp in params["conv"]:
        w_oihw = jnp.transpose(lp["w"], (3, 2, 0, 1))
        y = lax.conv_general_dilated(
            x, w_oihw, (1, 1), [(2, 2), (2, 2)],
            dimension_numbers=("NCHW", "OIHW", "NCHW"),
            precision=lax.Precision.HIGHEST)
        y = y + lp["b"][None, :, None, None]
        y = (y - lp["mean"][None, :, None, None]) / jnp.sqrt(
            lp["var"][None, :, None, None] + eps)
        y = y * lp["gamma"][None, :, None, None] + lp["beta"][None, :, None, None]
        y = jnp.maximum(y, 0.0)
        x = lax.reduce_window(y, -jnp.inf, lax.max,
                              (1, 1, 2, 2), (1, 1, 2, 2), "VALID")
    n = x.shape[0]
    # torch: x.view(N, -1) flattens NCHW order (c*125 + h).
    flat = x.reshape(n, -1)
    # fc1_w is stored (h, c)-major; permute it to the torch (c, h) flatten.
    w1 = params["fc1_w"].reshape(125, 128, 256).transpose(1, 0, 2)
    w1 = w1.reshape(125 * 128, 256)
    h = jnp.maximum(
        jnp.dot(flat, w1, precision=lax.Precision.HIGHEST)
        + params["fc1_b"], 0.0)
    return (jnp.dot(h, params["fc2_w"], precision=lax.Precision.HIGHEST)
            + params["fc2_b"])


if __name__ == "__main__":
    key = jax.random.PRNGKey(0)
    kx, kp = jax.random.split(key)
    # fc1 = Linear(128*125*1, 256) => input spatial must be 2000 x 16 (4 pools).
    x = jax.random.normal(kx, (2, 1, 2000, 16), jnp.float32)  # NCHW
    params = init_params(kp)
    prep = prepare_params(params)

    out = jax.jit(cnn_forward)(x, prep)
    out = jax.block_until_ready(out)
    assert out.shape == (2, 7), out.shape

    ref = reference_forward(x, params)
    err = float(jnp.max(jnp.abs(out - ref)))
    tol = 5e-2 * (1.0 + float(jnp.max(jnp.abs(ref))))
    assert err < tol, f"mismatch: max|diff|={err} tol={tol}"

    print("KERNEL_OK")
</pallas_src>

<mosaic_0001>
module attributes {stable_mosaic.version = 11 : i64} {
  func.func @kernel(%arg0: memref<8x128xf32, #tpu.memory_space<vmem>>, %arg1: memref<8x128xf32, #tpu.memory_space<vmem>>) attributes {dimension_semantics = [], scalar_prefetch = 0 : i64, scratch_operands = 0 : i64, tpu.core_type = #tpu.core_type<tc>} {
    %c0 = arith.constant 0 : index
    %c0_0 = arith.constant 0 : index
    %0 = vector.load %arg0[%c0, %c0_0] : memref<8x128xf32, #tpu.memory_space<vmem>>, vector<8x128xf32>
    %c1_i32 = arith.constant 1 : i32
    %1 = tpu.dynamic_rotate %0 by %c1_i32 dim 1 : vector<8x128xf32>, i32 -> vector<8x128xf32>
    %c0_1 = arith.constant 0 : index
    %c0_2 = arith.constant 0 : index
    %2 = vector.load %arg1[%c0_1, %c0_2] : memref<8x128xf32, #tpu.memory_space<vmem>>, vector<8x128xf32>
    tpu.vector_store %arg1[%c0_1, %c0_2], %1 {strides = array<i32>} : memref<8x128xf32, #tpu.memory_space<vmem>>, vector<8x128xf32>,
    return
  }
}

</mosaic_0001>

<llo_original>
// kernel: tpu_custom_call.1
$region0: #{tpu_custom_call.1}
  #allocation0 [shape = 'u32[]', space=smem, size = 0x4, offset = 0x4, fixed_abs, tag = 'smem constant byte address 0x4 - core index']
  #allocation1 [shape = 'u32[144,128]{1,0:T(1,128)}', space=vmem, size = 0x12000, scoped, tag = 'internal scratch']
  %s0 = inlined_call_operand.hbm [shape: f32[8,128], index: 0, kind: input, shape index: {}]
  %s1 = inlined_call_operand.hbm [shape: f32[8,128], index: 1, kind: output, shape index: {}]
  %s2 = sld [smem:[#allocation0]]
  $region18: #{tpu_custom_call.1} parent=0
    _
  %s4 = ssub.s32 1, %s2
  %s5 = scalar_select 0, %s4, %s2
  $region1: #{tpu_custom_call.1} parent=0
    #allocation2 [shape = 'u8[4096]{0}', space=vmem, size = 0x1000, scoped, tag = 'input window, operand 0, single buffered']
    #allocation3 [shape = 's32[1]{0}', space=sflag, size = 0x4, scoped, tag = 'scoped memory for tpu_custom_call.1']
    #allocation4 [shape = 's32[1]{0}', space=sflag, size = 0x4, scoped, tag = 'scoped memory for tpu_custom_call.1']
    #allocation5 [shape = 'u8[4096]{0}', space=vmem, size = 0x1000, scoped, tag = 'output window, operand 0, single buffered']
    %6 = vsyncpa [#allocation3], 0
    %7 = vsyncpa [#allocation4], 0
    // Predicated region
    $region2: #{tpu_custom_call.1} parent=1 // pred_check
      _
    $region3: #{tpu_custom_call.1} parent=1 // pred_check_branch
      %9 = sbr.rel (0) target = $region5
    $region4: #{tpu_custom_call.1} parent=1 // pred_region
      %s11 = ssub.s32 128, 128
      %12 = vsyncadd [#allocation3], %s11
      %s14 = sshll.u32 [#allocation2], 4
      %s15 = int_to_ptr.vmem [resolvable:$true] %s14
      %17 = dma.hbm_to_vmem [thread:$0]  %s0, 128, %s15, [#allocation3]
    $region5: #{tpu_custom_call.1} parent=1 // pred_fallthru
      _
    // Predicated region
    $region6: #{tpu_custom_call.1} parent=1 // pred_check
      _
    $region7: #{tpu_custom_call.1} parent=1 // pred_check_branch
      %19 = sbr.rel (0) target = $region9
    $region8: #{tpu_custom_call.1} parent=1 // pred_region
      %20 = dma.done [#allocation3], 128
    $region9: #{tpu_custom_call.1} parent=1 // pred_fallthru
      _
    %v21 = vld [vmem:[#allocation2] sm:$0xff]
    %22 = vrot.lane.b32.xlu0 %v21, 1
    %v23 = vpop.permute.xlu0 %22
    %24 = vst [vmem:[#allocation5] sm:$0xff] %v23
    // Predicated region
    $region10: #{tpu_custom_call.1} parent=1 // pred_check
      _
    $region11: #{tpu_custom_call.1} parent=1 // pred_check_branch
      %26 = sbr.rel (0) target = $region13
    $region12: #{tpu_custom_call.1} parent=1 // pred_region
      %s28 = ssub.s32 128, 128
      %29 = vsyncadd [#allocation4], %s28
      %s31 = sshll.u32 [#allocation5], 4
      %s32 = int_to_ptr.vmem [resolvable:$true] %s31
      %34 = dma.vmem_to_hbm [thread:$0]  %s32, 128, %s1, [#allocation4]
    $region13: #{tpu_custom_call.1} parent=1 // pred_fallthru
      _
    // Predicated region
    $region14: #{tpu_custom_call.1} parent=1 // pred_check
      _
    $region15: #{tpu_custom_call.1} parent=1 // pred_check_branch
      %36 = sbr.rel (0) target = $region17
    $region16: #{tpu_custom_call.1} parent=1 // pred_region
      %37 = dma.done [#allocation4], 128
    $region17: #{tpu_custom_call.1} parent=1 // pred_fallthru
      _
    %38 = vsyncpa [#allocation3], 1
    %39 = vsyncpa [#allocation4], 1

</llo_original>
